<compile_context>
chip_gen: v7x
topology: tpu7x:2x2x1
jax: 0.10.0
libtpu: 0.0.40
codegen_flags: <defaults>
</compile_context>

<pallas_src>
import jax
import jax.numpy as jnp
from jax.experimental import pallas as pl
from jax.experimental.pallas import tpu as pltpu


def _round_up(x, m):
    return ((x + m - 1) // m) * m


# ----------------------------------------------------------------------------
# Pallas kernel: fused binary N-ary TreeLSTM cell over a batch of nodes.
#   xin : (TB, In + 2H)  = [x | hL | hR]            (f32, cast to bf16 for MXU)
#   cc  : (TB, 2H)       = [cL | cR]                (f32)
#   w   : (In + 2H, 5H)  gate columns [i|o|fL|fR|u] (bf16, VMEM-resident)
#   b   : (1, 5H)                                   (f32)
#   hc  : (TB, 2H)       = [h_new | c_new]          (f32, single packed store)
# ----------------------------------------------------------------------------
def tree_cell_kernel(xin_ref, cc_ref, w_ref, b_ref, hc_ref):
    H = hc_ref.shape[-1] // 2

    inp = xin_ref[...].astype(w_ref.dtype)  # bf16 MXU operand
    # Single MXU pass (K = In + 2H, N = 5H) replaces the three matmuls and the
    # per-gate adds; f32 accumulation.
    g = jnp.dot(inp, w_ref[...], preferred_element_type=jnp.float32) + b_ref[...]

    # Sigmoid over the first 4H packed gate columns (lane-tile aligned slice),
    # via exp + approx reciprocal (EUP slot).  Gate math stays in f32.
    sig = pl.reciprocal(1.0 + jnp.exp(-g[:, : 4 * H]), approx=True)
    i_g = sig[:, 0:H]
    o_g = sig[:, H:2 * H]
    f_l = sig[:, 2 * H:3 * H]
    f_r = sig[:, 3 * H:4 * H]
    u_g = jnp.tanh(g[:, 4 * H:5 * H])

    cc = cc_ref[...]
    c_l = cc[:, :H]
    c_r = cc[:, H:]

    c_new = i_g * u_g + f_l * c_l + f_r * c_r
    h_new = o_g * jnp.tanh(c_new)

    # One packed lane-dense store for both states.
    hc_ref[...] = jnp.concatenate([h_new, c_new], axis=-1).astype(hc_ref.dtype)


def tree_cell_level(xin, cc, w, b):
    """Fused TreeLSTM cell on one level batch. Returns (B, 2H) = [h | c]."""
    B, K = xin.shape
    two_h = cc.shape[-1]
    five_h = w.shape[-1]
    H = two_h // 2

    # Pad the level batch to a sublane multiple; tile at most 128 rows per grid
    # step so large levels are pipelined and (on v7x) split across TensorCores.
    TB = min(_round_up(max(B, 1), 8), 128)
    B_pad = _round_up(max(B, 1), TB)
    if B_pad != B:
        xin = jnp.pad(xin, ((0, B_pad - B), (0, 0)))
        cc = jnp.pad(cc, ((0, B_pad - B), (0, 0)))
    grid = (B_pad // TB,)

    hc = pl.pallas_call(
        tree_cell_kernel,
        out_shape=jax.ShapeDtypeStruct((B_pad, two_h), jnp.float32),
        grid=grid,
        in_specs=[
            pl.BlockSpec((TB, K), lambda i: (i, 0)),
            pl.BlockSpec((TB, two_h), lambda i: (i, 0)),
            # Constant block index -> weights/bias DMA'd once, VMEM-resident
            # across the whole batch grid.
            pl.BlockSpec((K, five_h), lambda i: (0, 0)),
            pl.BlockSpec((1, five_h), lambda i: (0, 0)),
        ],
        out_specs=pl.BlockSpec((TB, two_h), lambda i: (i, 0)),
        compiler_params=pltpu.CompilerParams(
            dimension_semantics=("parallel",),
            # Explicit VMEM budget (actual footprint << 1 MiB); fits v7x's
            # 64 MiB VMEM with double-buffering intact.
            vmem_limit_bytes=32 * 1024 * 1024,
        ),
        cost_estimate=pl.CostEstimate(
            flops=2 * B_pad * K * five_h,
            transcendentals=6 * B_pad * H,
            bytes_accessed=4 * (B_pad * K + 2 * B_pad * two_h + five_h)
            + 2 * K * five_h,
        ),
    )(xin, cc, w, b)
    return hc[:B]


def _tree_cell_ref(xin, cc, w, b):
    """Pure-JAX reference of the fused cell (for correctness checking)."""
    H = cc.shape[-1] // 2
    g = jnp.dot(xin.astype(jnp.bfloat16).astype(jnp.float32),
                w.astype(jnp.float32)) + b
    sig = 1.0 / (1.0 + jnp.exp(-g[:, : 4 * H]))
    i_g, o_g = sig[:, :H], sig[:, H:2 * H]
    f_l, f_r = sig[:, 2 * H:3 * H], sig[:, 3 * H:4 * H]
    u_g = jnp.tanh(g[:, 4 * H:])
    c_l, c_r = cc[:, :H], cc[:, H:]
    c_new = i_g * u_g + f_l * c_l + f_r * c_r
    h_new = o_g * jnp.tanh(c_new)
    return jnp.concatenate([h_new, c_new], axis=-1)


# ----------------------------------------------------------------------------
# TreeEncoderBatch (JAX/Pallas port of the PyTorch module)
# ----------------------------------------------------------------------------
class Node:
    def __init__(self, value, children=()):
        self.value = value          # int token id or None
        self.children = list(children)


class TreeEncoderBatch:
    def __init__(self, input_size, hidden_size, num_embeddings, key,
                 forget_bias=0.0):
        self.input_size = input_size
        self.hidden_size = hidden_size
        ks = jax.random.split(key, 4)
        scale = 0.1
        # Canonical TreeCell parameters (N-ary TreeLSTM, num_children=2),
        # each packed per weight as columns [ i | o | u | f ].
        self.wx = scale * jax.random.normal(ks[0], (input_size, 4 * hidden_size), jnp.float32)
        self.ul = scale * jax.random.normal(ks[1], (hidden_size, 4 * hidden_size), jnp.float32)
        self.ur = scale * jax.random.normal(ks[2], (hidden_size, 4 * hidden_size), jnp.float32)
        self.b = jnp.zeros((1, 4 * hidden_size), jnp.float32)
        self.initialize_forget_bias(forget_bias)
        # self.embedding is assigned externally in the original; built here.
        self.embedding = scale * jax.random.normal(ks[3], (num_embeddings, input_size), jnp.float32)
        # register_buffer('zero_buffer', zeros(1, 1, hidden_size))
        self.zero_buffer = jnp.zeros((1, 1, hidden_size), jnp.float32)

    def initialize_forget_bias(self, bias_value):
        H = self.hidden_size
        self.b = self.b.at[:, 3 * H:].set(bias_value)
        self._pack_weights()

    def _pack_weights(self):
        """Fuse Wx/UL/UR/b into one bf16 MXU operand with gate columns
        [ i | o | f_left | f_right | u ].  Zero blocks keep the per-child
        forget-gate semantics: f_left sees only UL_f.hL, f_right only UR_f.hR.
        # TODO(synk): full Tai et al. N-ary TreeLSTM would sum U_f^{kl}.h_l over
        # all children per forget gate; kept identical to the prior TreeCell port.
        """
        H = self.hidden_size

        def split(wm):
            return wm[:, 0:H], wm[:, H:2 * H], wm[:, 2 * H:3 * H], wm[:, 3 * H:4 * H]

        xi, xo, xu, xf = split(self.wx)
        li, lo, lu, lf = split(self.ul)
        ri, ro, ru, rf = split(self.ur)
        bi, bo, bu, bf = split(self.b)
        zh = jnp.zeros((H, H), jnp.float32)
        w_x = jnp.concatenate([xi, xo, xf, xf, xu], axis=1)   # (In, 5H)
        w_l = jnp.concatenate([li, lo, lf, zh, lu], axis=1)   # (H, 5H)
        w_r = jnp.concatenate([ri, ro, zh, rf, ru], axis=1)   # (H, 5H)
        self.w_packed = jnp.concatenate([w_x, w_l, w_r], axis=0).astype(jnp.bfloat16)
        self.b_packed = jnp.concatenate([bi, bo, bf, bf, bu], axis=1)  # (1, 5H) f32

    # ---- op: encode_none_node ------------------------------------------------
    def encode_none_node(self):
        # (annotations (1,1,1,H), hidden (1,1,H), cell (1,1,H))
        return (self.zero_buffer[:, None], self.zero_buffer, self.zero_buffer)

    # ---- tree flattening (replaces the torchfold traversal) -------------------
    @staticmethod
    def _flatten_levels(root):
        """BFS the tree into per-depth batches.  Returns (levels, node_pos) with
        levels[d] = (values, left_idx, right_idx); left/right are positions in
        level d+1 or -1 for a missing / None-valued child."""
        levels = []
        node_pos = {}
        current = [root]
        while current:
            nxt = []
            vals, lefts, rights = [], [], []
            for pos, n in enumerate(current):
                node_pos[id(n)] = (len(levels), pos)
                vals.append(int(n.value))
                kids = list(n.children)[:2]      # TreeCell has num_children=2
                slots = []
                for c in kids:
                    if c is not None and c.value is not None:
                        slots.append(len(nxt))
                        nxt.append(c)
                    else:
                        slots.append(-1)
                while len(slots) < 2:
                    slots.append(-1)
                lefts.append(slots[0])
                rights.append(slots[1])
            levels.append((vals, lefts, rights))
            current = nxt
        return levels, node_pos

    # ---- forward ---------------------------------------------------------------
    def forward(self, node):
        if node is None or node.value is None:
            return self.encode_none_node()

        H = self.hidden_size
        levels, node_pos = self._flatten_levels(node)

        h_levels = [None] * len(levels)
        h_next = jnp.zeros((0, H), jnp.float32)   # hidden of the level below
        c_next = jnp.zeros((0, H), jnp.float32)

        # Bottom-up: ONE fused pallas_call per tree level (B = nodes at level).
        for d in range(len(levels) - 1, -1, -1):
            vals, lefts, rights = levels[d]
            sentinel = h_next.shape[0]            # index of the zero row
            li = jnp.asarray([l if l >= 0 else sentinel for l in lefts], jnp.int32)
            ri = jnp.asarray([r if r >= 0 else sentinel for r in rights], jnp.int32)

            zero_row = jnp.zeros((1, H), jnp.float32)
            table_h = jnp.concatenate([h_next, zero_row], axis=0)
            table_c = jnp.concatenate([c_next, zero_row], axis=0)

            x = self.embedding[jnp.asarray(vals, jnp.int32)]              # (n, In)
            xin = jnp.concatenate([x, table_h[li], table_h[ri]], axis=-1)  # (n, In+2H)
            cc = jnp.concatenate([table_c[li], table_c[ri]], axis=-1)      # (n, 2H)

            hc = tree_cell_level(xin, cc, self.w_packed, self.b_packed)
            h_levels[d] = hc[:, :H]
            h_next, c_next = hc[:, :H], hc[:, H:]

        # Annotations: pre-order [self, left-subtree..., right-subtree...] with a
        # single zero row per missing child (same order as the original torch.cat).
        level_offsets, off = [], 0
        for d in range(len(levels)):
            level_offsets.append(off)
            off += len(levels[d][0])
        h_all = jnp.concatenate([jnp.zeros((1, H), jnp.float32)] + h_levels, axis=0)

        def ann_rows(n):
            if n is None or n.value is None:
                return [0]
            d, p = node_pos[id(n)]
            rows = [1 + level_offsets[d] + p]
            kids = list(n.children)[:2]
            while len(kids) < 2:
                kids.append(None)
            for c in kids:
                rows += ann_rows(c)
            return rows

        rows = jnp.asarray(ann_rows(node), jnp.int32)
        annotations = h_all[rows][None, None]        # (1, 1, n_rows, H)
        root_h = h_levels[0][0:1][None]              # (1, 1, H)
        root_c = c_next[0:1][None]                   # (1, 1, H)
        return annotations, root_h, root_c


# ----------------------------------------------------------------------------
if __name__ == "__main__":
    input_size = 32
    hidden_size = 32
    num_embeddings = 10

    key = jax.random.PRNGKey(0)
    encoder = TreeEncoderBatch(input_size, hidden_size, num_embeddings, key,
                               forget_bias=3.0)

    # 1) Kernel vs pure-JAX reference on a small level batch.
    k1, k2 = jax.random.split(jax.random.PRNGKey(1))
    Bt = 8
    xin = 0.1 * jax.random.normal(k1, (Bt, input_size + 2 * hidden_size), jnp.float32)
    cc = 0.1 * jax.random.normal(k2, (Bt, 2 * hidden_size), jnp.float32)
    hc_kernel = tree_cell_level(xin, cc, encoder.w_packed, encoder.b_packed)
    hc_ref = _tree_cell_ref(xin, cc, encoder.w_packed, encoder.b_packed)
    jax.block_until_ready(hc_kernel)
    assert hc_kernel.shape == (Bt, 2 * hidden_size), hc_kernel.shape
    assert bool(jnp.allclose(hc_kernel, hc_ref, atol=5e-2, rtol=5e-2)), \
        float(jnp.max(jnp.abs(hc_kernel - hc_ref)))

    # 2) Full tree forward.  Tree:      0
    #                                  / \
    #                                 1   2
    #                                /
    #                               3
    tree = Node(0, [Node(1, [Node(3)]), Node(2)])
    annotations, root_h, root_c = encoder.forward(tree)
    jax.block_until_ready((annotations, root_h, root_c))

    # 4 real nodes; each missing child contributes one zero annotation row:
    # node3 -> 2, node1 -> 1, node2 -> 2, root -> 0  =>  4 + 5 = 9 rows.
    assert annotations.shape == (1, 1, 9, hidden_size), annotations.shape
    assert root_h.shape == (1, 1, hidden_size), root_h.shape
    assert root_c.shape == (1, 1, hidden_size), root_c.shape
    assert bool(jnp.all(jnp.isfinite(annotations)))
    assert bool(jnp.all(jnp.isfinite(root_h))) and bool(jnp.all(jnp.isfinite(root_c)))

    print("KERNEL_OK")
</pallas_src>

<mosaic_0001>
module attributes {stable_mosaic.version = 11 : i64} {
  func.func @tree_cell_kernel(%arg0: i32, %arg1: memref<8x96xf32, #tpu.memory_space<vmem>>, %arg2: memref<8x64xf32, #tpu.memory_space<vmem>>, %arg3: memref<96x160xbf16, #tpu.memory_space<vmem>>, %arg4: memref<1x160xf32, #tpu.memory_space<vmem>>, %arg5: memref<8x64xf32, #tpu.memory_space<vmem>>) attributes {dimension_semantics = [#tpu.dimension_semantics<parallel>], iteration_bounds = array<i64: 1>, scalar_prefetch = 0 : i64, scratch_operands = 0 : i64, tpu.core_type = #tpu.core_type<tc>, window_params = [{transform_indices = @transform_0, window_bounds = array<i64: 8, 96>}, {transform_indices = @transform_1, window_bounds = array<i64: 8, 64>}, {pipeline_mode = #tpu.pipeline_mode<synchronous>, transform_indices = @transform_2, window_bounds = array<i64: 96, 160>}, {pipeline_mode = #tpu.pipeline_mode<synchronous>, transform_indices = @transform_3, window_bounds = array<i64: 1, 160>}, {transform_indices = @transform_4, window_bounds = array<i64: 8, 64>}]} {
    %c0 = arith.constant 0 : index
    %c0_0 = arith.constant 0 : index
    %0 = vector.load %arg1[%c0, %c0_0] : memref<8x96xf32, #tpu.memory_space<vmem>>, vector<8x96xf32>
    %1 = arith.truncf %0 : vector<8x96xf32> to vector<8x96xbf16>
    %c0_1 = arith.constant 0 : index
    %c0_2 = arith.constant 0 : index
    %2 = vector.load %arg3[%c0_1, %c0_2] : memref<96x160xbf16, #tpu.memory_space<vmem>>, vector<96x160xbf16>
    %cst = arith.constant dense<0.000000e+00> : vector<8x160xf32>
    %3 = tpu.matmul %1, %2, %cst {dimension_numbers = #tpu.dot_dimension_numbers<[1], [0], [0], [1], [0, 0, 1, 1], [], []>} : vector<8x96xbf16>, vector<96x160xbf16>, vector<8x160xf32> -> vector<8x160xf32>
    %c0_3 = arith.constant 0 : index
    %c0_4 = arith.constant 0 : index
    %4 = vector.load %arg4[%c0_3, %c0_4] : memref<1x160xf32, #tpu.memory_space<vmem>>, vector<1x160xf32>
    %5 = vector.broadcast %4 : vector<1x160xf32> to vector<8x160xf32>
    %6 = arith.addf %3, %5 : vector<8x160xf32>
    %7 = vector.extract_strided_slice %6 {offsets = [0, 0], sizes = [8, 128], strides = [1, 1]} : vector<8x160xf32> to vector<8x128xf32>
    %cst_5 = arith.constant 0.000000e+00 : f32
    %8 = vector.broadcast %cst_5 : f32 to vector<8x128xf32>
    %9 = arith.subf %8, %7 : vector<8x128xf32>
    %10 = math.exp %9 : vector<8x128xf32>
    %cst_6 = arith.constant 1.000000e+00 : f32
    %11 = vector.broadcast %cst_6 : f32 to vector<8x128xf32>
    %12 = arith.addf %11, %10 : vector<8x128xf32>
    %13 = tpu.reciprocal %12 {approx = true} : vector<8x128xf32> -> vector<8x128xf32>
    %14 = vector.extract_strided_slice %13 {offsets = [0, 0], sizes = [8, 32], strides = [1, 1]} : vector<8x128xf32> to vector<8x32xf32>
    %15 = vector.extract_strided_slice %13 {offsets = [0, 32], sizes = [8, 32], strides = [1, 1]} : vector<8x128xf32> to vector<8x32xf32>
    %16 = vector.extract_strided_slice %13 {offsets = [0, 64], sizes = [8, 32], strides = [1, 1]} : vector<8x128xf32> to vector<8x32xf32>
    %17 = vector.extract_strided_slice %13 {offsets = [0, 96], sizes = [8, 32], strides = [1, 1]} : vector<8x128xf32> to vector<8x32xf32>
    %18 = vector.extract_strided_slice %6 {offsets = [0, 128], sizes = [8, 32], strides = [1, 1]} : vector<8x160xf32> to vector<8x32xf32>
    %19 = math.tanh %18 : vector<8x32xf32>
    %c0_7 = arith.constant 0 : index
    %c0_8 = arith.constant 0 : index
    %20 = vector.load %arg2[%c0_7, %c0_8] : memref<8x64xf32, #tpu.memory_space<vmem>>, vector<8x64xf32>
    %21 = vector.extract_strided_slice %20 {offsets = [0, 0], sizes = [8, 32], strides = [1, 1]} : vector<8x64xf32> to vector<8x32xf32>
    %22 = vector.extract_strided_slice %20 {offsets = [0, 32], sizes = [8, 32], strides = [1, 1]} : vector<8x64xf32> to vector<8x32xf32>
    %23 = arith.mulf %14, %19 : vector<8x32xf32>
    %24 = arith.mulf %16, %21 : vector<8x32xf32>
    %25 = arith.addf %23, %24 : vector<8x32xf32>
    %26 = arith.mulf %17, %22 : vector<8x32xf32>
    %27 = arith.addf %25, %26 : vector<8x32xf32>
    %28 = math.tanh %27 : vector<8x32xf32>
    %29 = arith.mulf %15, %28 : vector<8x32xf32>
    %30 = tpu.concatenate %29, %27 in 1 : vector<8x32xf32>, vector<8x32xf32> -> vector<8x64xf32>
    %c0_9 = arith.constant 0 : index
    %c0_10 = arith.constant 0 : index
    %31 = vector.load %arg5[%c0_9, %c0_10] : memref<8x64xf32, #tpu.memory_space<vmem>>, vector<8x64xf32>
    tpu.vector_store %arg5[%c0_9, %c0_10], %30 {strides = array<i32>} : memref<8x64xf32, #tpu.memory_space<vmem>>, vector<8x64xf32>,
    return
  }
  func.func @transform_0(%arg0: i32) -> (i32, i32) {
    %c0_i32 = arith.constant 0 : i32
    %c0_i32_0 = arith.constant 0 : i32
    return %arg0, %c0_i32 : i32, i32
  }
  func.func @transform_1(%arg0: i32) -> (i32, i32) {
    %c0_i32 = arith.constant 0 : i32
    %c0_i32_0 = arith.constant 0 : i32
    return %arg0, %c0_i32 : i32, i32
  }
  func.func @transform_2(%arg0: i32) -> (i32, i32) {
    %c0_i32 = arith.constant 0 : i32
    %c0_i32_0 = arith.constant 0 : i32
    %c0_i32_1 = arith.constant 0 : i32
    return %c0_i32, %c0_i32_0 : i32, i32
  }
  func.func @transform_3(%arg0: i32) -> (i32, i32) {
    %c0_i32 = arith.constant 0 : i32
    %c0_i32_0 = arith.constant 0 : i32
    %c0_i32_1 = arith.constant 0 : i32
    return %c0_i32, %c0_i32_0 : i32, i32
  }
  func.func @transform_4(%arg0: i32) -> (i32, i32) {
    %c0_i32 = arith.constant 0 : i32
    %c0_i32_0 = arith.constant 0 : i32
    return %arg0, %c0_i32 : i32, i32
  }
}

</mosaic_0001>

<llo_original>
// kernel: tpu_custom_call.1
$region0: #{tpu_custom_call.1}
  #allocation0 [shape = 'u32[]', space=smem, size = 0x4, offset = 0x4, fixed_abs, tag = 'smem constant byte address 0x4 - core index']
  #allocation1 [shape = 'u32[144,128]{1,0:T(1,128)}', space=vmem, size = 0x12000, scoped, tag = 'internal scratch']
  %s0 = inlined_call_operand.vmem [shape: f32[8,96], index: 0, kind: input, shape index: {}]
  %s1 = inlined_call_operand.vmem [shape: f32[8,64], index: 1, kind: input, shape index: {}]
  %s2 = inlined_call_operand.vmem [shape: bf16[96,160], index: 2, kind: input, shape index: {}]
  %s3 = inlined_call_operand.vmem [shape: f32[1,160], index: 3, kind: input, shape index: {}]
  %s4 = inlined_call_operand.hbm [shape: f32[8,64], index: 4, kind: output, shape index: {}]
  %s5 = sld [smem:[#allocation0]]
  $region26: #{tpu_custom_call.1} parent=0
    _
  %s7 = ssub.s32 1, %s5
  %s8 = scalar_select 0, %s7, %s5
  $region1: #{tpu_custom_call.1} parent=0
    #allocation2 [shape = 'u8[4096]{0}', space=vmem, size = 0x1000, scoped, tag = 'output window, operand 0, single buffered']
    #allocation3 [shape = 's32[1]{0}', space=sflag, size = 0x4, scoped, tag = 'scoped memory for tpu_custom_call.1']
    %9 = vsyncpa [#allocation3], 0
    // Predicated region
    $region2: #{tpu_custom_call.1} parent=1 // pred_check
      _
    $region3: #{tpu_custom_call.1} parent=1 // pred_check_branch
      %11 = sbr.rel (0) target = $region5
    $region4: #{tpu_custom_call.1} parent=1 // pred_region
      _
    $region5: #{tpu_custom_call.1} parent=1 // pred_fallthru
      _
    // Predicated region
    $region6: #{tpu_custom_call.1} parent=1 // pred_check
      _
    $region7: #{tpu_custom_call.1} parent=1 // pred_check_branch
      %13 = sbr.rel (0) target = $region9
    $region8: #{tpu_custom_call.1} parent=1 // pred_region
      _
    $region9: #{tpu_custom_call.1} parent=1 // pred_fallthru
      _
    // Predicated region
    $region10: #{tpu_custom_call.1} parent=1 // pred_check
      _
    $region11: #{tpu_custom_call.1} parent=1 // pred_check_branch
      %15 = sbr.rel (0) target = $region13
    $region12: #{tpu_custom_call.1} parent=1 // pred_region
      _
    $region13: #{tpu_custom_call.1} parent=1 // pred_fallthru
      _
    // Predicated region
    $region14: #{tpu_custom_call.1} parent=1 // pred_check
      _
    $region15: #{tpu_custom_call.1} parent=1 // pred_check_branch
      %17 = sbr.rel (0) target = $region17
    $region16: #{tpu_custom_call.1} parent=1 // pred_region
      _
    $region17: #{tpu_custom_call.1} parent=1 // pred_fallthru
      _
    %v19 = vld [vmem:[%s0] sm:$0xff]
    %v20 = vpack.c.bf16 %v19, %v19
    %v21 = vld [vmem:[%s2] sm:$0xff]
    %v22 = vld [vmem:[%s2 + $0x8] sm:$0xff]
    %v23 = vld [vmem:[%s2 + $0x10] sm:$0xff]
    %v24 = vld [vmem:[%s2 + $0x18] sm:$0xff]
    %v25 = vld [vmem:[%s2 + $0x20] sm:$0xff]
    %v26 = vld [vmem:[%s2 + $0x28] sm:$0xff]
    %v27 = vld [vmem:[%s2 + $0x30] sm:$0xff]
    %v28 = vld [vmem:[%s2 + $0x38] sm:$0xff]
    %v29 = vld [vmem:[%s2 + $0x40] sm:$0xff]
    %v30 = vld [vmem:[%s2 + $0x48] sm:$0xff]
    %v31 = vld [vmem:[%s2 + $0x50] sm:$0xff]
    %v32 = vld [vmem:[%s2 + $0x58] sm:$0xff]
    %v33 = vld [vmem:[%s3] sm:$0x3]
    %v35 = vlaneseq
    %v36 = vshrl.u32 %v35, 7
    %v37 = vsub.s32 0, %v36
    %v38 = vrot.slane %v33, %v37
    %v39 = vlaneseq
    %v40 = vshrl.u32 %v39, 7
    %v41 = vsub.s32 1, %v40
    %v42 = vrot.slane %v33, %v41
    %v57 = vunpack.c.l.b16 %v21
    %v58 = vunpack.c.h.b16 %v21
    %v59 = vunpack.c.l.b16 %v22
    %v60 = vunpack.c.h.b16 %v22
    %v61 = vunpack.c.l.b16 %v23
    %v62 = vunpack.c.h.b16 %v23
    %v63 = vunpack.c.l.b16 %v24
    %v64 = vunpack.c.h.b16 %v24
    %v65 = vunpack.c.l.b16 %v25
    %v66 = vunpack.c.h.b16 %v25
    %v67 = vunpack.c.l.b16 %v26
    %v68 = vunpack.c.h.b16 %v26
    %v69 = vunpack.c.l.b16 %v27
    %v70 = vunpack.c.h.b16 %v27
    %v71 = vunpack.c.l.b16 %v28
    %v72 = vunpack.c.h.b16 %v28
    %v73 = vunpack.c.l.b16 %v29
    %v74 = vunpack.c.h.b16 %v29
    %v75 = vunpack.c.l.b16 %v30
    %v76 = vunpack.c.h.b16 %v30
    %v77 = vunpack.c.l.b16 %v31
    %v78 = vunpack.c.h.b16 %v31
    %v79 = vunpack.c.l.b16 %v32
    %v80 = vunpack.c.h.b16 %v32
    %v81 = vpack.c.b16 %v59, %v57
    %v82 = vpack.c.b16 %v60, %v58
    %v83 = vpack.c.b16 %v63, %v61
    %v84 = vpack.c.b16 %v64, %v62
    %v85 = vpack.c.b16 %v67, %v65
    %v86 = vpack.c.b16 %v68, %v66
    %v87 = vpack.c.b16 %v71, %v69
    %v88 = vpack.c.b16 %v72, %v70
    %v89 = vpack.c.b16 %v75, %v73
    %v90 = vpack.c.b16 %v76, %v74
    %v91 = vpack.c.b16 %v79, %v77
    %v92 = vpack.c.b16 %v80, %v78
    %vm105 = vcmask 785408
    %v107 = vsel %vm105, %v20, 0
    %109 = vmatprep.subr.bf16.mxu0 %v82
    %110 = vmatpush1.bf16.msra.mxu0 %v81
    %111 = vmatprep.subr.bf16.mxu0 %v84
    %112 = vmatpush1.bf16.msra.mxu0 %v83
    %113 = vmatprep.subr.bf16.mxu0 %v86
    %114 = vmatpush1.bf16.msra.mxu0 %v85
    %115 = vmatprep.subr.bf16.mxu0 %v88
    %116 = vmatpush1.bf16.msra.mxu0 %v87
    %117 = vmatprep.subr.bf16.mxu0 %v90
    %118 = vmatpush1.bf16.msra.mxu0 %v89
    %119 = vmatprep.subr.bf16.mxu0 %v92
    %120 = vmatpush1.bf16.msra.mxu0 %v91
    %121 = vmatprep.subr.bf16.mxu0 0
    %122 = vmatpush1.bf16.msra.mxu0 0
    %123 = vmatprep.subr.bf16.mxu0 0
    %124 = vmatpush1.bf16.msra.mxu0 0
    %125 = vmatprep.subr.bf16.mxu0 0
    %126 = vmatpush1.bf16.msra.mxu0 0
    %127 = vmatprep.subr.bf16.mxu0 0
    %128 = vmatpush1.bf16.msra.mxu0 0
    %129 = vmatprep.subr.bf16.mxu0 0
    %130 = vmatpush1.bf16.msra.mxu0 0
    %131 = vmatprep.subr.bf16.mxu0 0
    %132 = vmatpush1.bf16.msra.mxu0 0
    %133 = vmatprep.subr.bf16.mxu0 0
    %134 = vmatpush1.bf16.msra.mxu0 0
    %135 = vmatprep.subr.bf16.mxu0 0
    %136 = vmatpush1.bf16.msra.mxu0 0
    %137 = vmatprep.subr.bf16.mxu0 0
    %138 = vmatpush1.bf16.msra.mxu0 0
    %139 = vmatprep.subr.bf16.mxu0 0
    %140 = vmatpush1.bf16.msra.mxu0 0
    %141 = vmatprep.mubr.bf16.mxu0 0
    %142 = vmatmul.mubr.bf16.gmra.mrb[0].mxu0 %v107
    %v143 = vpop.f32.mrb[0].mxu0
    %v144 = vadd.f32 %v38, %v143
    %v145 = vpop.f32.mrb[0].mxu0
    %v146 = vadd.f32 %v42, %v145
    %v147 = vpop.f32.mrb[0].mxu0
    %v148 = vpop.f32.mrb[0].mxu0
    %149 = vdwg.mxu0
    %v150 = vsub.f32 0.0, %v144
    %v151 = vmul.f32 %v150, 1.442695
    %v152 = vpow.pop %v151
    %v153 = vadd.f32 %v152, 1.0
    %v154 = vrcp.pop %v153
    %v155 = vtanh.pop %v146
    %v156 = vld [vmem:[%s1] sm:$0xff]
    %v157 = vmul.f32 %v154, %v155
    %159 = vrot.lane.b32.xlu0 %v156, 64
    %v160 = vpop.permute.xlu0 %159
    %v162 = vmul.f32 %v154, %v160
    %164 = vrot.lane.b32.xlu0 %v162, 64
    %v165 = vpop.permute.xlu0 %164
    %v167 = vadd.f32 %v157, %v165
    %168 = vrot.lane.b32.xlu0 %v162, 32
    %v169 = vpop.permute.xlu0 %168
    %v171 = vadd.f32 %v167, %v169
    %v172 = vtanh.pop %v171
    %174 = vrot.lane.b32.xlu0 %v172, 32
    %v175 = vpop.permute.xlu0 %174
    %v177 = vmul.f32 %v154, %v175
    %179 = vrot.lane.b32.xlu0 %v177, 96
    %v180 = vpop.permute.xlu0 %179
    %183 = vrot.lane.b32.xlu0 %v171, 32
    %v184 = vpop.permute.xlu0 %183
    %vm186 = vcmask 261120
    %v187 = vsel %vm186, %v180, %v184
    %vm188 = vcmask 523264
    %189 = vst.msk [vmem:[#allocation2] sm:$0xff] %vm188, %v187
    // Predicated region
    $region18: #{tpu_custom_call.1} parent=1 // pred_check
      _
    $region19: #{tpu_custom_call.1} parent=1 // pred_check_branch
      %191 = sbr.rel (0) target = $region21
    $region20: #{tpu_custom_call.1} parent=1 // pred_region
      %s193 = ssub.s32 128, 128
      %194 = vsyncadd [#allocation3], %s193
      %s196 = sshll.u32 [#allocation2], 4
      %s197 = int_to_ptr.vmem [resolvable:$true] %s196
      %199 = dma.vmem_to_hbm [thread:$0]  %s197, 128, %s4, [#allocation3]
    $region21: #{tpu_custom_call.1} parent=1 // pred_fallthru
      _
    // Predicated region
    $region22: #{tpu_custom_call.1} parent=1 // pred_check
      _
    $region23: #{tpu_custom_call.1} parent=1 // pred_check_branch
      %201 = sbr.rel (0) target = $region25
    $region24: #{tpu_custom_call.1} parent=1 // pred_region
      %202 = dma.done [#allocation3], 128
    $region25: #{tpu_custom_call.1} parent=1 // pred_fallthru
      _
    %203 = vsyncpa [#allocation3], 1

</llo_original>
